<compile_context>
chip_gen: v6e
topology: v6e:2x2x1
jax: 0.10.0
libtpu: 0.0.40
codegen_flags: <defaults>
</compile_context>

<pallas_src>
import functools

import jax
import jax.numpy as jnp
from jax.experimental import pallas as pl
from jax.experimental.pallas import tpu as pltpu


def _round_down(v, m):
    return (v // m) * m


# ----------------------------------------------------------------------------
# Main kernel: S % 128 == 0, layout (N, C, R, 128), block (1, C, SB, 128).
# ----------------------------------------------------------------------------
def _dice_kernel_aligned(x_ref, t_ref, tp_ref, sp_ref, sg_ref, *, C, SB, R):
    n = pl.program_id(0)   # batch
    j = pl.program_id(1)   # row-tile within the flattened spatial dim

    @pl.when(jnp.logical_and(n == 0, j == 0))
    def _():
        tp_ref[...] = jnp.zeros_like(tp_ref)
        sp_ref[...] = jnp.zeros_like(sp_ref)
        sg_ref[...] = jnp.zeros_like(sg_ref)

    logits = x_ref[0].astype(jnp.float32)                    # (C, SB, 128)

    if C > 1:
        # Softmax over the leading class axis: pure per-slab VALU/EUP work.
        m = jnp.max(logits, axis=0, keepdims=True)            # (1, SB, 128)
        e = jnp.exp(logits - m)                                # (C, SB, 128)
        denom = jnp.sum(e, axis=0, keepdims=True)              # (1, SB, 128)
        inv = pl.reciprocal(denom, approx=True)                # EUP slot
        inv = inv * (2.0 - denom * inv)                        # one Newton step
        p = e * inv
    else:
        p = 1.0 / (1.0 + jnp.exp(-logits))                     # sigmoid

    t = t_ref[0, 0].astype(jnp.int32)                          # (SB, 128)

    # Tail-row mask only exists (statically) when SB does not divide R.
    ragged = (R % SB) != 0
    if ragged:
        row = jax.lax.broadcasted_iota(jnp.int32, (SB, 128), 0)
        valid = (row + j * SB) < R                             # (SB, 128)

    tp_rows, sp_rows, sg_rows = [], [], []
    for c in range(C):                                         # small static loop
        pc = p[c]                                              # (SB, 128)
        hit = t == c
        if ragged:
            hit = jnp.logical_and(hit, valid)
            pc = jnp.where(valid, pc, 0.0)                     # select: NaN-safe
        tp_rows.append(jnp.sum(jnp.where(hit, pc, 0.0), axis=0, keepdims=True))
        sp_rows.append(jnp.sum(pc, axis=0, keepdims=True))
        sg_rows.append(jnp.sum(jnp.where(hit, 1.0, 0.0), axis=0, keepdims=True))

    # Lane-dense (C, 128) accumulators; output blocks stay resident in VMEM.
    tp_ref[...] += jnp.concatenate(tp_rows, axis=0)
    sp_ref[...] += jnp.concatenate(sp_rows, axis=0)
    sg_ref[...] += jnp.concatenate(sg_rows, axis=0)


# ----------------------------------------------------------------------------
# Fallback kernel: ragged S, layout (N, C, S), block (1, C, TS).
# ----------------------------------------------------------------------------
def _dice_kernel_ragged(x_ref, t_ref, tp_ref, sp_ref, sg_ref, *, C, TS, S):
    n = pl.program_id(0)
    j = pl.program_id(1)

    @pl.when(jnp.logical_and(n == 0, j == 0))
    def _():
        tp_ref[...] = jnp.zeros_like(tp_ref)
        sp_ref[...] = jnp.zeros_like(sp_ref)
        sg_ref[...] = jnp.zeros_like(sg_ref)

    logits = x_ref[0].astype(jnp.float32)                      # (C, TS)

    ragged = (S % TS) != 0
    if ragged:
        col = jax.lax.broadcasted_iota(jnp.int32, (1, TS), 1)
        valid = (col + j * TS) < S                             # (1, TS)

    if C > 1:
        m = jnp.max(logits, axis=0, keepdims=True)
        e = jnp.exp(logits - m)
        denom = jnp.sum(e, axis=0, keepdims=True)
        inv = pl.reciprocal(denom, approx=True)
        inv = inv * (2.0 - denom * inv)
        p = e * inv
    else:
        p = 1.0 / (1.0 + jnp.exp(-logits))

    t = t_ref[0].astype(jnp.int32)                             # (1, TS)
    cls = jax.lax.broadcasted_iota(jnp.int32, (C, TS), 0)
    hit = t == cls                                             # (C, TS)
    if ragged:
        p = jnp.where(valid, p, 0.0)                           # select: NaN-safe
        hit = jnp.logical_and(hit, valid)

    g = jnp.where(hit, 1.0, 0.0)
    pg = jnp.where(hit, p, 0.0)

    tp_ref[...] += jnp.sum(pg, axis=-1, keepdims=True)         # (C, 1)
    sp_ref[...] += jnp.sum(p, axis=-1, keepdims=True)
    sg_ref[...] += jnp.sum(g, axis=-1, keepdims=True)


# ----------------------------------------------------------------------------
# Wrapper
# ----------------------------------------------------------------------------
def dice_loss(x, target, weight_v=None, alpha=0.5, beta=0.5, smooth=1e-07,
              block_bytes=4 * 1024 * 1024, vmem_limit_bytes=48 * 1024 * 1024):
    """Equivalent of Dice().forward(x, target).

    x:      float (N, C, d1, ..., dn) raw logits (softmax applied in-kernel);
            f32 or bf16 (bf16 halves HBM read traffic).
    target: int   (N, d1, ..., dn)    class indices in [0, C); any integer
            dtype (int8/int16/int32) is consumed natively, no up-cast copy.
    """
    N, C = x.shape[0], x.shape[1]
    S = 1
    for d in x.shape[2:]:
        S *= d

    # Keep targets in their native integer dtype; only widen exotic ones.
    if (not jnp.issubdtype(target.dtype, jnp.integer)
            or jnp.dtype(target.dtype).itemsize > 4):
        target = target.astype(jnp.int32)

    x_isz = jnp.dtype(x.dtype).itemsize
    t_isz = jnp.dtype(target.dtype).itemsize

    compiler_params = pltpu.CompilerParams(
        dimension_semantics=("arbitrary", "arbitrary"),
        vmem_limit_bytes=vmem_limit_bytes)

    if S % 128 == 0:
        # ---------------- main, sublane-dense path ----------------
        R = S // 128
        x4 = x.reshape(N, C, R, 128)                 # free reshape
        t4 = target.reshape(N, 1, R, 128)            # free reshape, native dtype

        # Sublane granularity for the row-tile: 8 / 16 / 32 for 4 / 2 / 1-byte.
        base = max(32 // x_isz, 32 // t_isz, 8)
        # Budget the tile by f32-equivalent compute bytes (bounds intermediates).
        sb = max(base, _round_down(block_bytes // (C * 128 * 4), base))
        SB = R if R <= sb else sb
        num_tiles = pl.cdiv(R, SB)

        kernel = functools.partial(_dice_kernel_aligned, C=C, SB=SB, R=R)
        tp, sp, sg = pl.pallas_call(
            kernel,
            out_shape=tuple(jax.ShapeDtypeStruct((C, 128), jnp.float32)
                            for _ in range(3)),
            grid_spec=pltpu.PrefetchScalarGridSpec(
                num_scalar_prefetch=0,
                grid=(N, num_tiles),
                in_specs=[
                    pl.BlockSpec((1, C, SB, 128), lambda n, j: (n, 0, j, 0)),
                    pl.BlockSpec((1, 1, SB, 128), lambda n, j: (n, 0, j, 0)),
                ],
                out_specs=tuple(pl.BlockSpec((C, 128), lambda n, j: (0, 0))
                                for _ in range(3)),
            ),
            compiler_params=compiler_params,
        )(x4, t4)
        # Single cross-lane reduce of the lane-dense accumulators, in plain JAX.
        tp = jnp.sum(tp, axis=-1)
        sp = jnp.sum(sp, axis=-1)
        sg = jnp.sum(sg, axis=-1)
    else:
        # ---------------- fallback: ragged flattened spatial dim ----------------
        x3 = x.reshape(N, C, S)
        t3 = target.reshape(N, 1, S)

        # ~6 f32 temporaries of shape (C, TS) peak in this kernel -> budget with
        # 8 bytes per element per class so everything stays well inside VMEM.
        ts = max(128, _round_down(block_bytes // (C * 8), 128))
        TS = S if S <= ts else ts
        num_tiles = pl.cdiv(S, TS)

        kernel = functools.partial(_dice_kernel_ragged, C=C, TS=TS, S=S)
        tp, sp, sg = pl.pallas_call(
            kernel,
            out_shape=tuple(jax.ShapeDtypeStruct((C, 1), jnp.float32)
                            for _ in range(3)),
            grid_spec=pltpu.PrefetchScalarGridSpec(
                num_scalar_prefetch=0,
                grid=(N, num_tiles),
                in_specs=[
                    pl.BlockSpec((1, C, TS), lambda n, j: (n, 0, j)),
                    pl.BlockSpec((1, 1, TS), lambda n, j: (n, 0, j)),
                ],
                out_specs=tuple(pl.BlockSpec((C, 1), lambda n, j: (0, 0))
                                for _ in range(3)),
            ),
            compiler_params=compiler_params,
        )(x3, t3)
        tp = tp[:, 0]
        sp = sp[:, 0]
        sg = sg[:, 0]

    false_neg = sg - tp                  # sum((1-p)*g)
    false_pos = sp - tp                  # sum(p*(1-g))
    dices = (tp + smooth) / (tp + alpha * false_neg + beta * false_pos + smooth)

    if weight_v is None:
        w = jnp.ones((C,), jnp.float32)
    else:
        w = jnp.asarray(weight_v, jnp.float32)
    # F.normalize(w, p=1, dim=0)
    w = w / jnp.maximum(jnp.sum(jnp.abs(w)), 1e-12)

    return jnp.sum(w * dices)


def _dice_loss_ref(x, target, weight_v=None, alpha=0.5, beta=0.5, smooth=1e-07):
    """Pure-JAX reference mirroring the PyTorch module."""
    C = x.shape[1]
    xf = x.astype(jnp.float32)
    p = jax.nn.softmax(xf, axis=1) if C > 1 else jax.nn.sigmoid(xf)
    p = jnp.moveaxis(p, 1, -1).reshape(-1, C)
    g = jax.nn.one_hot(target.reshape(-1), C, dtype=jnp.float32)
    tp = jnp.sum(p * g, axis=0)
    fn = jnp.sum((1 - p) * g, axis=0)
    fp = jnp.sum(p * (1 - g), axis=0)
    dices = (tp + smooth) / (tp + alpha * fn + beta * fp + smooth)
    w = (jnp.ones((C,), jnp.float32) if weight_v is None
         else jnp.asarray(weight_v, jnp.float32))
    w = w / jnp.maximum(jnp.sum(jnp.abs(w)), 1e-12)
    return jnp.sum(w * dices)


if __name__ == "__main__":
    key = jax.random.PRNGKey(0)
    k1, k2, k3, k4, k5, k6, k7, k8 = jax.random.split(key, 8)

    # Test 1: canonical NCHW case, f32 logits, aligned path, single tile.
    N, C, H, W = 2, 4, 16, 16
    x = jax.random.normal(k1, (N, C, H, W), dtype=jnp.float32)
    t = jax.random.randint(k2, (N, H, W), 0, C, dtype=jnp.int32)
    out = jax.block_until_ready(dice_loss(x, t))
    ref = _dice_loss_ref(x, t)
    assert jnp.allclose(out, ref, atol=2e-5, rtol=1e-4), (out, ref)

    # Test 2: bf16 logits, ragged spatial size (S=300), class weights.
    x2 = jax.random.normal(k3, (2, 4, 10, 30), dtype=jnp.float32).astype(jnp.bfloat16)
    t2 = jax.random.randint(k4, (2, 10, 30), 0, 4, dtype=jnp.int32)
    wv = [1.0, 2.0, 3.0, 4.0]
    out2 = jax.block_until_ready(dice_loss(x2, t2, weight_v=wv))
    ref2 = _dice_loss_ref(x2, t2, weight_v=wv)
    assert jnp.allclose(out2, ref2, atol=2e-4, rtol=1e-3), (out2, ref2)

    # Test 3: aligned path, multi-row-tile with a ragged row tail (R=40, SB=32),
    # int8 targets consumed natively, C=3.
    x3 = jax.random.normal(k5, (2, 3, 5120), dtype=jnp.float32)
    t3 = jax.random.randint(k6, (2, 5120), 0, 3, dtype=jnp.int32).astype(jnp.int8)
    out3 = jax.block_until_ready(dice_loss(x3, t3, block_bytes=49152))
    ref3 = _dice_loss_ref(x3, t3)
    assert jnp.allclose(out3, ref3, atol=2e-5, rtol=1e-4), (out3, ref3)

    # Test 4: ragged fallback path with multiple lane tiles + ragged tail
    # (S=300, TS=128 -> 3 tiles, 44-element tail).
    x4 = jax.random.normal(k7, (2, 4, 10, 30), dtype=jnp.float32)
    t4 = jax.random.randint(k8, (2, 10, 30), 0, 4, dtype=jnp.int32)
    out4 = jax.block_until_ready(dice_loss(x4, t4, block_bytes=4096))
    ref4 = _dice_loss_ref(x4, t4)
    assert jnp.allclose(out4, ref4, atol=2e-5, rtol=1e-4), (out4, ref4)

    # Test 5: C=1 sigmoid branch (aligned path).
    x5 = jax.random.normal(k1, (2, 1, 16, 16), dtype=jnp.float32)
    t5 = jnp.zeros((2, 16, 16), dtype=jnp.int32)
    out5 = jax.block_until_ready(dice_loss(x5, t5))
    ref5 = _dice_loss_ref(x5, t5)
    assert jnp.allclose(out5, ref5, atol=2e-5, rtol=1e-4), (out5, ref5)

    print("KERNEL_OK")
</pallas_src>

<mosaic_0001>
module attributes {stable_mosaic.version = 11 : i64} {
  func.func @_dice_kernel_aligned(%arg0: i32, %arg1: i32, %arg2: memref<1x4x2x128xf32, #tpu.memory_space<vmem>>, %arg3: memref<1x1x2x128xi32, #tpu.memory_space<vmem>>, %arg4: memref<4x128xf32, #tpu.memory_space<vmem>>, %arg5: memref<4x128xf32, #tpu.memory_space<vmem>>, %arg6: memref<4x128xf32, #tpu.memory_space<vmem>>) attributes {dimension_semantics = [#tpu.dimension_semantics<arbitrary>, #tpu.dimension_semantics<arbitrary>], iteration_bounds = array<i64: 2, 1>, scalar_prefetch = 0 : i64, scratch_operands = 0 : i64, tpu.core_type = #tpu.core_type<tc>, window_params = [{transform_indices = @transform_0, window_bounds = array<i64: 1, 4, 2, 128>}, {transform_indices = @transform_1, window_bounds = array<i64: 1, 1, 2, 128>}, {pipeline_mode = #tpu.pipeline_mode<synchronous>, transform_indices = @transform_2, window_bounds = array<i64: 4, 128>}, {pipeline_mode = #tpu.pipeline_mode<synchronous>, transform_indices = @transform_3, window_bounds = array<i64: 4, 128>}, {pipeline_mode = #tpu.pipeline_mode<synchronous>, transform_indices = @transform_4, window_bounds = array<i64: 4, 128>}]} {
    %c0_i32 = arith.constant 0 : i32
    %0 = arith.cmpi eq, %arg0, %c0_i32 : i32
    %c0_i32_0 = arith.constant 0 : i32
    %1 = arith.cmpi eq, %arg1, %c0_i32_0 : i32
    %2 = arith.andi %0, %1 : i1
    %3 = arith.extui %2 : i1 to i32
    %c0_i32_1 = arith.constant 0 : i32
    %4 = arith.cmpi ne, %3, %c0_i32_1 : i32
    scf.if %4 {
      %cst_48 = arith.constant 0.000000e+00 : f32
      %95 = vector.broadcast %cst_48 : f32 to vector<4x128xf32>
      %c0_49 = arith.constant 0 : index
      %c0_50 = arith.constant 0 : index
      %96 = vector.load %arg4[%c0_49, %c0_50] : memref<4x128xf32, #tpu.memory_space<vmem>>, vector<4x128xf32>
      tpu.vector_store %arg4[%c0_49, %c0_50], %95 {strides = array<i32>} : memref<4x128xf32, #tpu.memory_space<vmem>>, vector<4x128xf32>,
      %cst_51 = arith.constant 0.000000e+00 : f32
      %97 = vector.broadcast %cst_51 : f32 to vector<4x128xf32>
      %c0_52 = arith.constant 0 : index
      %c0_53 = arith.constant 0 : index
      %98 = vector.load %arg5[%c0_52, %c0_53] : memref<4x128xf32, #tpu.memory_space<vmem>>, vector<4x128xf32>
      tpu.vector_store %arg5[%c0_52, %c0_53], %97 {strides = array<i32>} : memref<4x128xf32, #tpu.memory_space<vmem>>, vector<4x128xf32>,
      %cst_54 = arith.constant 0.000000e+00 : f32
      %99 = vector.broadcast %cst_54 : f32 to vector<4x128xf32>
      %c0_55 = arith.constant 0 : index
      %c0_56 = arith.constant 0 : index
      %100 = vector.load %arg6[%c0_55, %c0_56] : memref<4x128xf32, #tpu.memory_space<vmem>>, vector<4x128xf32>
      tpu.vector_store %arg6[%c0_55, %c0_56], %99 {strides = array<i32>} : memref<4x128xf32, #tpu.memory_space<vmem>>, vector<4x128xf32>,
    } else {
    }
    %c0 = arith.constant 0 : index
    %c0_2 = arith.constant 0 : index
    %c0_3 = arith.constant 0 : index
    %c0_4 = arith.constant 0 : index
    %5 = vector.load %arg2[%c0, %c0_2, %c0_3, %c0_4] : memref<1x4x2x128xf32, #tpu.memory_space<vmem>>, vector<1x4x2x128xf32>
    %6 = vector.shape_cast %5 : vector<1x4x2x128xf32> to vector<4x2x128xf32>
    %cst = arith.constant dense<0xFF800000> : vector<2x128xf32>
    %7 = vector.multi_reduction <maximumf>, %6, %cst [0] : vector<4x2x128xf32> to vector<2x128xf32>
    %8 = vector.shape_cast %7 : vector<2x128xf32> to vector<1x2x128xf32>
    %9 = vector.broadcast %8 : vector<1x2x128xf32> to vector<4x2x128xf32>
    %10 = arith.subf %6, %9 : vector<4x2x128xf32>
    %11 = math.exp %10 : vector<4x2x128xf32>
    %cst_5 = arith.constant dense<0.000000e+00> : vector<2x128xf32>
    %12 = vector.multi_reduction <add>, %11, %cst_5 [0] : vector<4x2x128xf32> to vector<2x128xf32>
    %13 = vector.shape_cast %12 : vector<2x128xf32> to vector<1x2x128xf32>
    %14 = tpu.reciprocal %13 {approx = true} : vector<1x2x128xf32> -> vector<1x2x128xf32>
    %15 = arith.mulf %13, %14 : vector<1x2x128xf32>
    %cst_6 = arith.constant 2.000000e+00 : f32
    %16 = vector.broadcast %cst_6 : f32 to vector<1x2x128xf32>
    %17 = arith.subf %16, %15 : vector<1x2x128xf32>
    %18 = arith.mulf %14, %17 : vector<1x2x128xf32>
    %19 = vector.broadcast %18 : vector<1x2x128xf32> to vector<4x2x128xf32>
    %20 = arith.mulf %11, %19 : vector<4x2x128xf32>
    %c0_7 = arith.constant 0 : index
    %c0_8 = arith.constant 0 : index
    %c0_9 = arith.constant 0 : index
    %c0_10 = arith.constant 0 : index
    %21 = vector.load %arg3[%c0_7, %c0_8, %c0_9, %c0_10] : memref<1x1x2x128xi32, #tpu.memory_space<vmem>>, vector<1x1x2x128xi32>
    %22 = vector.shape_cast %21 : vector<1x1x2x128xi32> to vector<2x128xi32>
    %23 = vector.extract_strided_slice %20 {offsets = [0, 0, 0], sizes = [1, 2, 128], strides = [1, 1, 1]} : vector<4x2x128xf32> to vector<1x2x128xf32>
    %24 = vector.shape_cast %23 : vector<1x2x128xf32> to vector<2x128xf32>
    %c0_i32_11 = arith.constant 0 : i32
    %25 = vector.broadcast %c0_i32_11 : i32 to vector<2x128xi32>
    %26 = arith.cmpi eq, %22, %25 : vector<2x128xi32>
    %cst_12 = arith.constant 0.000000e+00 : f32
    %27 = vector.broadcast %cst_12 : f32 to vector<2x128xf32>
    %28 = arith.select %26, %24, %27 : vector<2x128xi1>, vector<2x128xf32>
    %cst_13 = arith.constant dense<0.000000e+00> : vector<128xf32>
    %29 = vector.multi_reduction <add>, %28, %cst_13 [0] : vector<2x128xf32> to vector<128xf32>
    %30 = vector.shape_cast %29 : vector<128xf32> to vector<1x128xf32>
    %cst_14 = arith.constant dense<0.000000e+00> : vector<128xf32>
    %31 = vector.multi_reduction <add>, %24, %cst_14 [0] : vector<2x128xf32> to vector<128xf32>
    %32 = vector.shape_cast %31 : vector<128xf32> to vector<1x128xf32>
    %cst_15 = arith.constant 1.000000e+00 : f32
    %cst_16 = arith.constant 0.000000e+00 : f32
    %33 = vector.broadcast %cst_15 : f32 to vector<2x128xf32>
    %34 = vector.broadcast %cst_16 : f32 to vector<2x128xf32>
    %35 = arith.select %26, %33, %34 : vector<2x128xi1>, vector<2x128xf32>
    %cst_17 = arith.constant dense<0.000000e+00> : vector<128xf32>
    %36 = vector.multi_reduction <add>, %35, %cst_17 [0] : vector<2x128xf32> to vector<128xf32>
    %37 = vector.shape_cast %36 : vector<128xf32> to vector<1x128xf32>
    %38 = vector.extract_strided_slice %20 {offsets = [1, 0, 0], sizes = [1, 2, 128], strides = [1, 1, 1]} : vector<4x2x128xf32> to vector<1x2x128xf32>
    %39 = vector.shape_cast %38 : vector<1x2x128xf32> to vector<2x128xf32>
    %c1_i32 = arith.constant 1 : i32
    %40 = vector.broadcast %c1_i32 : i32 to vector<2x128xi32>
    %41 = arith.cmpi eq, %22, %40 : vector<2x128xi32>
    %cst_18 = arith.constant 0.000000e+00 : f32
    %42 = vector.broadcast %cst_18 : f32 to vector<2x128xf32>
    %43 = arith.select %41, %39, %42 : vector<2x128xi1>, vector<2x128xf32>
    %cst_19 = arith.constant dense<0.000000e+00> : vector<128xf32>
    %44 = vector.multi_reduction <add>, %43, %cst_19 [0] : vector<2x128xf32> to vector<128xf32>
    %45 = vector.shape_cast %44 : vector<128xf32> to vector<1x128xf32>
    %cst_20 = arith.constant dense<0.000000e+00> : vector<128xf32>
    %46 = vector.multi_reduction <add>, %39, %cst_20 [0] : vector<2x128xf32> to vector<128xf32>
    %47 = vector.shape_cast %46 : vector<128xf32> to vector<1x128xf32>
    %cst_21 = arith.constant 1.000000e+00 : f32
    %cst_22 = arith.constant 0.000000e+00 : f32
    %48 = vector.broadcast %cst_21 : f32 to vector<2x128xf32>
    %49 = vector.broadcast %cst_22 : f32 to vector<2x128xf32>
    %50 = arith.select %41, %48, %49 : vector<2x128xi1>, vector<2x128xf32>
    %cst_23 = arith.constant dense<0.000000e+00> : vector<128xf32>
    %51 = vector.multi_reduction <add>, %50, %cst_23 [0] : vector<2x128xf32> to vector<128xf32>
    %52 = vector.shape_cast %51 : vector<128xf32> to vector<1x128xf32>
    %53 = vector.extract_strided_slice %20 {offsets = [2, 0, 0], sizes = [1, 2, 128], strides = [1, 1, 1]} : vector<4x2x128xf32> to vector<1x2x128xf32>
    %54 = vector.shape_cast %53 : vector<1x2x128xf32> to vector<2x128xf32>
    %c2_i32 = arith.constant 2 : i32
    %55 = vector.broadcast %c2_i32 : i32 to vector<2x128xi32>
    %56 = arith.cmpi eq, %22, %55 : vector<2x128xi32>
    %cst_24 = arith.constant 0.000000e+00 : f32
    %57 = vector.broadcast %cst_24 : f32 to vector<2x128xf32>
    %58 = arith.select %56, %54, %57 : vector<2x128xi1>, vector<2x128xf32>
    %cst_25 = arith.constant dense<0.000000e+00> : vector<128xf32>
    %59 = vector.multi_reduction <add>, %58, %cst_25 [0] : vector<2x128xf32> to vector<128xf32>
    %60 = vector.shape_cast %59 : vector<128xf32> to vector<1x128xf32>
    %cst_26 = arith.constant dense<0.000000e+00> : vector<128xf32>
    %61 = vector.multi_reduction <add>, %54, %cst_26 [0] : vector<2x128xf32> to vector<128xf32>
    %62 = vector.shape_cast %61 : vector<128xf32> to vector<1x128xf32>
    %cst_27 = arith.constant 1.000000e+00 : f32
    %cst_28 = arith.constant 0.000000e+00 : f32
    %63 = vector.broadcast %cst_27 : f32 to vector<2x128xf32>
    %64 = vector.broadcast %cst_28 : f32 to vector<2x128xf32>
    %65 = arith.select %56, %63, %64 : vector<2x128xi1>, vector<2x128xf32>
    %cst_29 = arith.constant dense<0.000000e+00> : vector<128xf32>
    %66 = vector.multi_reduction <add>, %65, %cst_29 [0] : vector<2x128xf32> to vector<128xf32>
    %67 = vector.shape_cast %66 : vector<128xf32> to vector<1x128xf32>
    %68 = vector.extract_strided_slice %20 {offsets = [3, 0, 0], sizes = [1, 2, 128], strides = [1, 1, 1]} : vector<4x2x128xf32> to vector<1x2x128xf32>
    %69 = vector.shape_cast %68 : vector<1x2x128xf32> to vector<2x128xf32>
    %c3_i32 = arith.constant 3 : i32
    %70 = vector.broadcast %c3_i32 : i32 to vector<2x128xi32>
    %71 = arith.cmpi eq, %22, %70 : vector<2x128xi32>
    %cst_30 = arith.constant 0.000000e+00 : f32
    %72 = vector.broadcast %cst_30 : f32 to vector<2x128xf32>
    %73 = arith.select %71, %69, %72 : vector<2x128xi1>, vector<2x128xf32>
    %cst_31 = arith.constant dense<0.000000e+00> : vector<128xf32>
    %74 = vector.multi_reduction <add>, %73, %cst_31 [0] : vector<2x128xf32> to vector<128xf32>
    %75 = vector.shape_cast %74 : vector<128xf32> to vector<1x128xf32>
    %cst_32 = arith.constant dense<0.000000e+00> : vector<128xf32>
    %76 = vector.multi_reduction <add>, %69, %cst_32 [0] : vector<2x128xf32> to vector<128xf32>
    %77 = vector.shape_cast %76 : vector<128xf32> to vector<1x128xf32>
    %cst_33 = arith.constant 1.000000e+00 : f32
    %cst_34 = arith.constant 0.000000e+00 : f32
    %78 = vector.broadcast %cst_33 : f32 to vector<2x128xf32>
    %79 = vector.broadcast %cst_34 : f32 to vector<2x128xf32>
    %80 = arith.select %71, %78, %79 : vector<2x128xi1>, vector<2x128xf32>
    %cst_35 = arith.constant dense<0.000000e+00> : vector<128xf32>
    %81 = vector.multi_reduction <add>, %80, %cst_35 [0] : vector<2x128xf32> to vector<128xf32>
    %82 = vector.shape_cast %81 : vector<128xf32> to vector<1x128xf32>
    %c0_36 = arith.constant 0 : index
    %c0_37 = arith.constant 0 : index
    %83 = vector.load %arg4[%c0_36, %c0_37] : memref<4x128xf32, #tpu.memory_space<vmem>>, vector<4x128xf32>
    %84 = tpu.concatenate %30, %45, %60, %75 in 0 : vector<1x128xf32>, vector<1x128xf32>, vector<1x128xf32>, vector<1x128xf32> -> vector<4x128xf32>
    %85 = arith.addf %83, %84 : vector<4x128xf32>
    %c0_38 = arith.constant 0 : index
    %c0_39 = arith.constant 0 : index
    %86 = vector.load %arg4[%c0_38, %c0_39] : memref<4x128xf32, #tpu.memory_space<vmem>>, vector<4x128xf32>
    tpu.vector_store %arg4[%c0_38, %c0_39], %85 {strides = array<i32>} : memref<4x128xf32, #tpu.memory_space<vmem>>, vector<4x128xf32>,
    %c0_40 = arith.constant 0 : index
    %c0_41 = arith.constant 0 : index
    %87 = vector.load %arg5[%c0_40, %c0_41] : memref<4x128xf32, #tpu.memory_space<vmem>>, vector<4x128xf32>
    %88 = tpu.concatenate %32, %47, %62, %77 in 0 : vector<1x128xf32>, vector<1x128xf32>, vector<1x128xf32>, vector<1x128xf32> -> vector<4x128xf32>
    %89 = arith.addf %87, %88 : vector<4x128xf32>
    %c0_42 = arith.constant 0 : index
    %c0_43 = arith.constant 0 : index
    %90 = vector.load %arg5[%c0_42, %c0_43] : memref<4x128xf32, #tpu.memory_space<vmem>>, vector<4x128xf32>
    tpu.vector_store %arg5[%c0_42, %c0_43], %89 {strides = array<i32>} : memref<4x128xf32, #tpu.memory_space<vmem>>, vector<4x128xf32>,
    %c0_44 = arith.constant 0 : index
    %c0_45 = arith.constant 0 : index
    %91 = vector.load %arg6[%c0_44, %c0_45] : memref<4x128xf32, #tpu.memory_space<vmem>>, vector<4x128xf32>
    %92 = tpu.concatenate %37, %52, %67, %82 in 0 : vector<1x128xf32>, vector<1x128xf32>, vector<1x128xf32>, vector<1x128xf32> -> vector<4x128xf32>
    %93 = arith.addf %91, %92 : vector<4x128xf32>
    %c0_46 = arith.constant 0 : index
    %c0_47 = arith.constant 0 : index
    %94 = vector.load %arg6[%c0_46, %c0_47] : memref<4x128xf32, #tpu.memory_space<vmem>>, vector<4x128xf32>
    tpu.vector_store %arg6[%c0_46, %c0_47], %93 {strides = array<i32>} : memref<4x128xf32, #tpu.memory_space<vmem>>, vector<4x128xf32>,
    return
  }
  func.func @transform_0(%arg0: i32, %arg1: i32) -> (i32, i32, i32, i32) {
    %c0_i32 = arith.constant 0 : i32
    %c0_i32_0 = arith.constant 0 : i32
    %c0_i32_1 = arith.constant 0 : i32
    return %arg0, %c0_i32, %arg1, %c0_i32_0 : i32, i32, i32, i32
  }
  func.func @transform_1(%arg0: i32, %arg1: i32) -> (i32, i32, i32, i32) {
    %c0_i32 = arith.constant 0 : i32
    %c0_i32_0 = arith.constant 0 : i32
    %c0_i32_1 = arith.constant 0 : i32
    return %arg0, %c0_i32, %arg1, %c0_i32_0 : i32, i32, i32, i32
  }
  func.func @transform_2(%arg0: i32, %arg1: i32) -> (i32, i32) {
    %c0_i32 = arith.constant 0 : i32
    %c0_i32_0 = arith.constant 0 : i32
    %c0_i32_1 = arith.constant 0 : i32
    return %c0_i32, %c0_i32_0 : i32, i32
  }
  func.func @transform_3(%arg0: i32, %arg1: i32) -> (i32, i32) {
    %c0_i32 = arith.constant 0 : i32
    %c0_i32_0 = arith.constant 0 : i32
    %c0_i32_1 = arith.constant 0 : i32
    return %c0_i32, %c0_i32_0 : i32, i32
  }
  func.func @transform_4(%arg0: i32, %arg1: i32) -> (i32, i32) {
    %c0_i32 = arith.constant 0 : i32
    %c0_i32_0 = arith.constant 0 : i32
    %c0_i32_1 = arith.constant 0 : i32
    return %c0_i32, %c0_i32_0 : i32, i32
  }
}

</mosaic_0001>

<llo_original>
// kernel: tpu_custom_call.1
$region0: #{tpu_custom_call.1}
  #allocation0 [shape = 'u32[]', space=smem, size = 0x4, offset = 0x4, fixed_abs, tag = 'smem constant byte address 0x4 - core index']
  #allocation1 [shape = 'u32[144,128]{1,0:T(1,128)}', space=vmem, size = 0x12000, scoped, tag = 'internal scratch']
  %s0 = inlined_call_operand.hbm [shape: f32[2,4,2,128], index: 0, kind: input, shape index: {}]
  %s1 = inlined_call_operand.hbm [shape: s32[2,1,2,128], index: 1, kind: input, shape index: {}]
  %s2 = inlined_call_operand.hbm [shape: f32[4,128], index: 2, kind: output, shape index: {0}]
  %s3 = inlined_call_operand.hbm [shape: f32[4,128], index: 3, kind: output, shape index: {1}]
  %s4 = inlined_call_operand.hbm [shape: f32[4,128], index: 4, kind: output, shape index: {2}]
  %5 = xla_tuple %s2, %s3, %s4
  %s6 = sld [smem:[#allocation0]]
  $region69: #{tpu_custom_call.1} parent=0
    _
  %s8 = ssub.s32 1, %s6
  %s9 = scalar_select 0, %s8, %s6
  $region1: #{tpu_custom_call.1} parent=0
    #allocation2 [shape = 'u8[8192]{0}', space=vmem, size = 0x2000, scoped, tag = 'input window, operand 0']
    #allocation3 [shape = 's32[2]{0}', space=sflag, size = 0x8, scoped, tag = 'scoped memory for tpu_custom_call.1']
    #allocation4 [shape = 's32[2]{0}', space=sflag, size = 0x8, scoped, tag = 'scoped memory for tpu_custom_call.1']
    #allocation5 [shape = 'u8[2048]{0}', space=vmem, size = 0x800, scoped, tag = 'input window, operand 1']
    #allocation6 [shape = 's32[2]{0}', space=sflag, size = 0x8, scoped, tag = 'scoped memory for tpu_custom_call.1']
    #allocation7 [shape = 'u8[2048]{0}', space=vmem, size = 0x800, scoped, tag = 'output window, operand 0, single buffered']
    #allocation8 [shape = 'u8[2048]{0}', space=vmem, size = 0x800, scoped, tag = 'output window, operand 1, single buffered']
    #allocation9 [shape = 's32[1]{0}', space=sflag, size = 0x4, scoped, tag = 'scoped memory for tpu_custom_call.1']
    #allocation10 [shape = 'u8[2048]{0}', space=vmem, size = 0x800, scoped, tag = 'output window, operand 2, single buffered']
    %10 = vsyncpa [#allocation3], 0
    %s11 = scalar_lea.sflag [#allocation3], 1
    %12 = vsyncpa %s11, 0
    %13 = vsyncpa [#allocation6], 0
    %s14 = scalar_lea.sflag [#allocation6], 1
    %15 = vsyncpa %s14, 0
    %16 = vsyncpa [#allocation4], 0
    %17 = vsyncpa [#allocation9], 0
    loop: start=0, step=1, limit=4
    $region2: #{tpu_custom_call.1} parent=1 // loop_pre_header
      _
    $region3: #{tpu_custom_call.1} parent=1 // loop_header
      %s19 = sphi 0, %s23
      %p20 = scmp.ge.s32.totalorder %s19, 4
      %s26 = sphi 0, %s38
      %s27 = sphi 0, %s34
      %s28 = sphi 0, %s26
      %s29 = sphi 0, %s27
      %s30 = sphi 0, %s28
      %s31 = sphi 0, %s29
      %s43 = sphi 0, %s45
      %s46 = sphi 0, %s43
      %s47 = sphi 0, %s46
      %s63 = sphi 0, %s47
      %s71 = sphi 0, %s73
      %s74 = sphi 0, %s71
      %s75 = sphi 0, %s74
      %s91 = sphi 0, %s75
      %s95 = sphi 0, %s95
      %s97 = sphi 0, %s95
      %s98 = sphi 0, %s97
      %s112 = sphi 0, %s98
      %s116 = sphi 0, %s116
      %s118 = sphi 0, %s116
      %s119 = sphi 0, %s118
      %s133 = sphi 0, %s119
      %s137 = sphi 0, %s137
      %s139 = sphi 0, %s137
      %s140 = sphi 0, %s139
      %s154 = sphi 0, %s140
    $region4: #{tpu_custom_call.1} parent=1 // loop_header_branch
      %22 = sbr.rel (%p20) target = $region8
    $region5: #{tpu_custom_call.1} parent=1 // loop_body
      %s24 = ssub.s32 %s19, 1
      %s25 = ssub.s32 %s19, 2
      %s32 = sadd.s32 1, %s27
      %p33 = scmp.ge.s32.totalorder %s32, 1
      %s34 = scalar_select %p33, 0, %s32
      %s35 = sadd.s32 1, %s26
      %s36 = scalar_select %p33, %s35, %s26
      %p37 = scmp.ge.s32.totalorder %s36, 2
      %s38 = scalar_select %p37, 0, %s36
      %s39 = ssub.s32 %s26, %s38
      %s40 = ssub.s32 %s27, %s34
      %s41 = sor.u32 %s39, %s40
      %p42 = scmp.eq.s32.totalorder %s41, 0
      %s44 = sadd.s32 %s43, 1
      %s45 = scalar_select %p42, %s43, %s44
      %p48 = pneg %p42
      %p49 = scmp.eq.s32.totalorder %s19, 1
      %p50 = por %p48, %p49
      %p51 = scmp.ne.s32.totalorder %s43, %s46
      %p52 = scmp.eq.s32.totalorder %s19, 0
      %p53 = por %p51, %p52
      %p54 = scmp.ne.s32.totalorder %s43, %s46
      %p55 = scmp.eq.s32.totalorder %s24, 1
      %p56 = por %p54, %p55
      %p57 = scmp.ne.s32.totalorder %s46, %s47
      %p58 = scmp.eq.s32.totalorder %s24, 0
      %p59 = por %p57, %p58
      %p60 = scmp.ne.s32.totalorder %s46, %s47
      %p61 = scmp.eq.s32.totalorder %s25, 1
      %p62 = por %p60, %p61
      %p64 = scmp.ne.s32.totalorder %s47, %s63
      %p65 = scmp.eq.s32.totalorder %s25, 0
      %p66 = por %p64, %p65
      %s67 = ssub.s32 %s26, %s38
      %s68 = ssub.s32 %s27, %s34
      %s69 = sor.u32 %s67, %s68
      %p70 = scmp.eq.s32.totalorder %s69, 0
      %s72 = sadd.s32 %s71, 1
      %s73 = scalar_select %p70, %s71, %s72
      %p76 = pneg %p70
      %p77 = scmp.eq.s32.totalorder %s19, 1
      %p78 = por %p76, %p77
      %p79 = scmp.ne.s32.totalorder %s71, %s74
      %p80 = scmp.eq.s32.totalorder %s19, 0
      %p81 = por %p79, %p80
      %p82 = scmp.ne.s32.totalorder %s71, %s74
      %p83 = scmp.eq.s32.totalorder %s24, 1
      %p84 = por %p82, %p83
      %p85 = scmp.ne.s32.totalorder %s74, %s75
      %p86 = scmp.eq.s32.totalorder %s24, 0
      %p87 = por %p85, %p86
      %p88 = scmp.ne.s32.totalorder %s74, %s75
      %p89 = scmp.eq.s32.totalorder %s25, 1
      %p90 = por %p88, %p89
      %p92 = scmp.ne.s32.totalorder %s75, %s91
      %p93 = scmp.eq.s32.totalorder %s25, 0
      %p94 = por %p92, %p93
      %s96 = sadd.s32 %s95, 1
      %p99 = scmp.eq.s32.totalorder %s19, 1
      %p100 = scmp.ne.s32.totalorder %s95, %s97
      %p101 = scmp.eq.s32.totalorder %s19, 0
      %p102 = por %p100, %p101
      %p103 = scmp.ne.s32.totalorder %s95, %s97
      %p104 = scmp.eq.s32.totalorder %s24, 1
      %p105 = por %p103, %p104
      %p106 = scmp.ne.s32.totalorder %s97, %s98
      %p107 = scmp.eq.s32.totalorder %s24, 0
      %p108 = por %p106, %p107
      %p109 = scmp.ne.s32.totalorder %s97, %s98
      %p110 = scmp.eq.s32.totalorder %s25, 1
      %p111 = por %p109, %p110
      %p113 = scmp.ne.s32.totalorder %s98, %s112
      %p114 = scmp.eq.s32.totalorder %s25, 0
      %p115 = por %p113, %p114
      %s117 = sadd.s32 %s116, 1
      %p120 = scmp.eq.s32.totalorder %s19, 1
      %p121 = scmp.ne.s32.totalorder %s116, %s118
      %p122 = scmp.eq.s32.totalorder %s19, 0
      %p123 = por %p121, %p122
      %p124 = scmp.ne.s32.totalorder %s116, %s118
      %p125 = scmp.eq.s32.totalorder %s24, 1
      %p126 = por %p124, %p125
      %p127 = scmp.ne.s32.totalorder %s118, %s119
      %p128 = scmp.eq.s32.totalorder %s24, 0
      %p129 = por %p127, %p128
      %p130 = scmp.ne.s32.totalorder %s118, %s119
      %p131 = scmp.eq.s32.totalorder %s25, 1
      %p132 = por %p130, %p131
      %p134 = scmp.ne.s32.totalorder %s119, %s133
      %p135 = scmp.eq.s32.totalorder %s25, 0
      %p136 = por %p134, %p135
      %s138 = sadd.s32 %s137, 1
      %p141 = scmp.eq.s32.totalorder %s19, 1
      %p142 = scmp.ne.s32.totalorder %s137, %s139
      %p143 = scmp.eq.s32.totalorder %s19, 0
      %p144 = por %p142, %p143
      %p145 = scmp.ne.s32.totalorder %s137, %s139
      %p146 = scmp.eq.s32.totalorder %s24, 1
      %p147 = por %p145, %p146
      %p148 = scmp.ne.s32.totalorder %s139, %s140
      %p149 = scmp.eq.s32.totalorder %s24, 0
      %p150 = por %p148, %p149
      %p151 = scmp.ne.s32.totalorder %s139, %s140
      %p152 = scmp.eq.s32.totalorder %s25, 1
      %p153 = por %p151, %p152
      %p155 = scmp.ne.s32.totalorder %s140, %s154
      %p156 = scmp.eq.s32.totalorder %s25, 0
      %p157 = por %p155, %p156
      %p158 = scmp.le.s32.totalorder 1, %s19
      %p159 = scmp.lt.s32.totalorder %s19, 3
      %p160 = pnand %p158, %p159
      %p161 = pneg %p160
      // Predicated region
      $region9: #{tpu_custom_call.1} parent=5 // pred_check
        _
      $region10: #{tpu_custom_call.1} parent=5 // pred_check_branch
        %163 = sbr.rel (%p160) target = $region12
      $region11: #{tpu_custom_call.1} parent=5 // pred_region
        %s164 = ssub.s32 %s19, 1
      $region12: #{tpu_custom_call.1} parent=5 // pred_fallthru
        _
      %p165 = scmp.lt.s32.totalorder %s19, 2
      // Predicated region
      $region13: #{tpu_custom_call.1} parent=5 // pred_check
        %p166 = pneg %p165
      $region14: #{tpu_custom_call.1} parent=5 // pred_check_branch
        %168 = sbr.rel (%p166) target = $region16
      $region15: #{tpu_custom_call.1} parent=5 // pred_region
        // Predicated region
        $region17: #{tpu_custom_call.1} parent=15 // pred_check
          %p169 = pneg %p53
        $region18: #{tpu_custom_call.1} parent=15 // pred_check_branch
          %171 = sbr.rel (%p169) target = $region20
        $region19: #{tpu_custom_call.1} parent=15 // pred_region
          %s172 = sand.u32 %s43, 1
          %s173 = scalar_lea.sflag [#allocation3], %s172
          %s174 = sand.u32 %s43, 1
          %s175 = smul.addr %s174, 8
          %s176 = scalar_lea.vmem [#allocation2], %s175
          %s178 = ssub.s32 128, 128
          %179 = vsyncadd %s173, %s178
          %s180 = smul.addr %s26, 4
          %s181 = sadd.s32 %s27, %s180
          %s182 = smul.addr %s181, 32
          %s183 = scalar_lea.hbm %s0, %s182
          %s184 = sshll.u32 %s176, 4
          %s185 = int_to_ptr.vmem [resolvable:$true] %s184
          %190 = dma.hbm_to_vmem [thread:$0]  %s183, 128, %s185, %s173, 32, 32, 2
        $region20: #{tpu_custom_call.1} parent=15 // pred_fallthru
          _
        // Predicated region
        $region21: #{tpu_custom_call.1} parent=15 // pred_check
          %p191 = pneg %p81
        $region22: #{tpu_custom_call.1} parent=15 // pred_check_branch
          %193 = sbr.rel (%p191) target = $region24
        $region23: #{tpu_custom_call.1} parent=15 // pred_region
          %s194 = sand.u32 %s71, 1
          %s195 = scalar_lea.sflag [#allocation6], %s194
          %s196 = sand.u32 %s71, 1
          %s197 = smul.addr %s196, 2
          %s198 = scalar_lea.vmem [#allocation5], %s197
          %s200 = ssub.s32 32, 32
          %201 = vsyncadd %s195, %s200
          %s202 = sadd.s32 %s27, %s26
          %s203 = smul.addr %s202, 32
          %s204 = scalar_lea.hbm %s1, %s203
          %s206 = sshll.u32 %s198, 4
          %s207 = int_to_ptr.vmem [resolvable:$true] %s206
          %209 = dma.hbm_to_vmem [thread:$0]  %s204, 32, %s207, %s195
        $region24: #{tpu_custom_call.1} parent=15 // pred_fallthru
          _
      $region16: #{tpu_custom_call.1} parent=5 // pred_fallthru
        _
      %p210 = scmp.le.s32.totalorder 1, %s19
      %p211 = scmp.lt.s32.totalorder %s19, 3
      %p212 = pnand %p210, %p211
      %p213 = pneg %p212
      // Predicated region
      $region25: #{tpu_custom_call.1} parent=5 // pred_check
        _
      $region26: #{tpu_custom_call.1} parent=5 // pred_check_branch
        %215 = sbr.rel (%p212) target = $region28
      $region27: #{tpu_custom_call.1} parent=5 // pred_region
        %s216 = ssub.s32 %s19, 1
        %s217 = sand.u32 %s46, 1
        %s218 = scalar_lea.sflag [#allocation3], %s217
        %s219 = sand.u32 %s46, 1
        %s220 = smul.addr %s219, 8
        %s221 = scalar_lea.vmem [#allocation2], %s220
        // Predicated region
        $region29: #{tpu_custom_call.1} parent=27 // pred_check
          %p222 = pneg %p59
        $region30: #{tpu_custom_call.1} parent=27 // pred_check_branch
          %224 = sbr.rel (%p222) target = $region32
        $region31: #{tpu_custom_call.1} parent=27 // pred_region
          %225 = dma.done %s218, 128
        $region32: #{tpu_custom_call.1} parent=27 // pred_fallthru
          _
        %s226 = sand.u32 %s74, 1
        %s227 = scalar_lea.sflag [#allocation6], %s226
        %s228 = sand.u32 %s74, 1
        %s229 = smul.addr %s228, 2
        %s230 = scalar_lea.vmem [#allocation5], %s229
        // Predicated region
        $region33: #{tpu_custom_call.1} parent=27 // pred_check
          %p231 = pneg %p87
        $region34: #{tpu_custom_call.1} parent=27 // pred_check_branch
          %233 = sbr.rel (%p231) target = $region36
        $region35: #{tpu_custom_call.1} parent=27 // pred_region
          %234 = dma.done %s227, 32
        $region36: #{tpu_custom_call.1} parent=27 // pred_fallthru
          _
        %s235 = sand.u32 %s46, 1
        %s236 = scalar_lea.sflag [#allocation3], %s235
        %s237 = sand.u32 %s46, 1
        %s238 = smul.addr %s237, 8
        %s239 = scalar_lea.vmem [#allocation2], %s238
        %p240 = pneg %p59
        %p241 = pneg %p56
        %s242 = sand.u32 %s74, 1
        %s243 = scalar_lea.sflag [#allocation6], %s242
        %s244 = sand.u32 %s74, 1
        %s245 = smul.addr %s244, 2
        %s246 = scalar_lea.vmem [#allocation5], %s245
        %p247 = pneg %p87
        %p248 = pneg %p84
        %p249 = pneg %p108
        %p250 = pneg %p105
        %p251 = pneg %p129
        %p252 = pneg %p126
        %p253 = pneg %p150
        %p254 = pneg %p147
        %p255 = scmp.eq.s32.totalorder %s28, 0
        %p256 = scmp.eq.s32.totalorder %s29, 0
        %p257 = pnand %p255, %p256
        %p258 = pneg %p257
        // Predicated region
        $region37: #{tpu_custom_call.1} parent=27 // pred_check
          _
        $region38: #{tpu_custom_call.1} parent=27 // pred_check_branch
          %260 = sbr.rel (%p257) target = $region40
        $region39: #{tpu_custom_call.1} parent=27 // pred_region
          %261 = vst [vmem:[#allocation7] sm:$0xf] 0.0
          %262 = vst [vmem:[#allocation8] sm:$0xf] 0.0
          %263 = vst [vmem:[#allocation10] sm:$0xf] 0.0
        $region40: #{tpu_custom_call.1} parent=27 // pred_fallthru
          _
        %v264 = vld [vmem:[%s221] sm:$0x3]
        %v265 = vld [vmem:[%s221 + $0x2] sm:$0x3]
        %v266 = vld [vmem:[%s221 + $0x4] sm:$0x3]
        %v267 = vld [vmem:[%s221 + $0x6] sm:$0x3]
        %vm268 = vcmask 1041408
        %v269 = vsel %vm268, %v264, -inf
        %v270 = vsel %vm268, %v265, -inf
        %v271 = vsel %vm268, %v266, -inf
        %v272 = vsel %vm268, %v267, -inf
        %v273 = vmax.f32 %v269, %v270
        %v274 = vmax.f32 %v271, %v272
        %v275 = vmax.f32 %v273, %v274
        %v276 = vsub.f32 %v264, %v275
        %v277 = vsub.f32 %v265, %v275
        %v278 = vsub.f32 %v266, %v275
        %v279 = vsub.f32 %v267, %v275
        %v280 = vmul.f32 %v276, 1.442695
        %v281 = vpow.pop %v280
        %v282 = vmul.f32 %v277, 1.442695
        %v283 = vpow.pop %v282
        %v284 = vmul.f32 %v278, 1.442695
        %v285 = vpow.pop %v284
        %v286 = vmul.f32 %v279, 1.442695
        %v287 = vpow.pop %v286
        %v288 = vsel %vm268, %v281, 0.0
        %v289 = vsel %vm268, %v283, 0.0
        %v290 = vadd.f32 %v288, %v289
        %v291 = vsel %vm268, %v285, 0.0
        %v292 = vadd.f32 %v290, %v291
        %v293 = vsel %vm268, %v287, 0.0
        %v294 = vadd.f32 %v292, %v293
        %v295 = vrcp.pop %v294
        %v296 = vmul.f32 %v294, %v295
        %v297 = vsub.f32 2.0, %v296
        %v298 = vmul.f32 %v295, %v297
        %v299 = vmul.f32 %v281, %v298
        %v300 = vmul.f32 %v283, %v298
        %v301 = vmul.f32 %v285, %v298
        %v302 = vmul.f32 %v287, %v298
        %v303 = vld [vmem:[%s230] sm:$0x3]
        %vm304 = vcmp.eq.s32.totalorder %v303, 0
        %v305 = vsel %vm304, %v299, 0.0
        %v306 = vsel %vm268, %v305, 0.0
        %v307 = vrot.slane %v306, 4
        %v308 = vadd.f32 %v306, %v307
        %v309 = vrot.slane %v308, 2
        %v310 = vadd.f32 %v308, %v309
        %v311 = vrot.slane %v310, 1
        %v312 = vadd.f32 %v310, %v311
        %v313 = vsel %vm268, %v299, 0.0
        %v314 = vrot.slane %v313, 4
        %v315 = vadd.f32 %v313, %v314
        %v316 = vrot.slane %v315, 2
        %v317 = vadd.f32 %v315, %v316
        %v318 = vrot.slane %v317, 1
        %v319 = vadd.f32 %v317, %v318
        %v320 = vsel %vm304, 1.0, 0.0
        %v321 = vsel %vm268, %v320, 0.0
        %v322 = vrot.slane %v321, 4
        %v323 = vadd.f32 %v321, %v322
        %v324 = vrot.slane %v323, 2
        %v325 = vadd.f32 %v323, %v324
        %v326 = vrot.slane %v325, 1
        %v327 = vadd.f32 %v325, %v326
        %vm328 = vcmp.eq.s32.totalorder %v303, 1
        %v329 = vsel %vm328, %v300, 0.0
        %v330 = vsel %vm268, %v329, 0.0
        %v331 = vrot.slane %v330, 4
        %v332 = vadd.f32 %v330, %v331
        %v333 = vrot.slane %v332, 2
        %v334 = vadd.f32 %v332, %v333
        %v335 = vrot.slane %v334, 1
        %v336 = vadd.f32 %v334, %v335
        %v337 = vsel %vm268, %v300, 0.0
        %v338 = vrot.slane %v337, 4
        %v339 = vadd.f32 %v337, %v338
        %v340 = vrot.slane %v339, 2
        %v341 = vadd.f32 %v339, %v340
        %v342 = vrot.slane %v341, 1
        %v343 = vadd.f32 %v341, %v342
        %v344 = vsel %vm328, 1.0, 0.0
        %v345 = vsel %vm268, %v344, 0.0
        %v346 = vrot.slane %v345, 4
        %v347 = vadd.f32 %v345, %v346
        %v348 = vrot.slane %v347, 2
        %v349 = vadd.f32 %v347, %v348
        %v350 = vrot.slane %v349, 1
        %v351 = vadd.f32 %v349, %v350
        %vm352 = vcmp.eq.s32.totalorder %v303, 2
        %v353 = vsel %vm352, %v301, 0.0
        %v354 = vsel %vm268, %v353, 0.0
        %v355 = vrot.slane %v354, 4
        %v356 = vadd.f32 %v354, %v355
        %v357 = vrot.slane %v356, 2
        %v358 = vadd.f32 %v356, %v357
        %v359 = vrot.slane %v358, 1
        %v360 = vadd.f32 %v358, %v359
        %v361 = vsel %vm268, %v301, 0.0
        %v362 = vrot.slane %v361, 4
        %v363 = vadd.f32 %v361, %v362
        %v364 = vrot.slane %v363, 2
        %v365 = vadd.f32 %v363, %v364
        %v366 = vrot.slane %v365, 1
        %v367 = vadd.f32 %v365, %v366
        %v368 = vsel %vm352, 1.0, 0.0
        %v369 = vsel %vm268, %v368, 0.0
        %v370 = vrot.slane %v369, 4
        %v371 = vadd.f32 %v369, %v370
        %v372 = vrot.slane %v371, 2
        %v373 = vadd.f32 %v371, %v372
        %v374 = vrot.slane %v373, 1
        %v375 = vadd.f32 %v373, %v374
        %vm376 = vcmp.eq.s32.totalorder %v303, 3
        %v377 = vsel %vm376, %v302, 0.0
        %v378 = vsel %vm268, %v377, 0.0
        %v379 = vrot.slane %v378, 4
        %v380 = vadd.f32 %v378, %v379
        %v381 = vrot.slane %v380, 2
        %v382 = vadd.f32 %v380, %v381
        %v383 = vrot.slane %v382, 1
        %v384 = vadd.f32 %v382, %v383
        %v385 = vsel %vm268, %v302, 0.0
        %v386 = vrot.slane %v385, 4
        %v387 = vadd.f32 %v385, %v386
        %v388 = vrot.slane %v387, 2
        %v389 = vadd.f32 %v387, %v388
        %v390 = vrot.slane %v389, 1
        %v391 = vadd.f32 %v389, %v390
        %v392 = vsel %vm376, 1.0, 0.0
        %v393 = vsel %vm268, %v392, 0.0
        %v394 = vrot.slane %v393, 4
        %v395 = vadd.f32 %v393, %v394
        %v396 = vrot.slane %v395, 2
        %v397 = vadd.f32 %v395, %v396
        %v398 = vrot.slane %v397, 1
        %v399 = vadd.f32 %v397, %v398
        %v400 = vld [vmem:[#allocation7] sm:$0xf]
        %vm401 = vcmask 1040384
        %v402 = vsel %vm401, %v312, %v336
        %v403 = vsel %vm268, %v402, %v360
        %vm404 = vcmask 1042432
        %v405 = vsel %vm404, %v403, %v384
        %v406 = vadd.f32 %v400, %v405
        %407 = vst [vmem:[#allocation7] sm:$0xf] %v406
        %v408 = vld [vmem:[#allocation8] sm:$0xf]
        %v409 = vsel %vm401, %v319, %v343
        %v410 = vsel %vm268, %v409, %v367
        %v411 = vsel %vm404, %v410, %v391
        %v412 = vadd.f32 %v408, %v411
        %413 = vst [vmem:[#allocation8] sm:$0xf] %v412
        %v414 = vld [vmem:[#allocation10] sm:$0xf]
        %v415 = vsel %vm401, %v327, %v351
        %v416 = vsel %vm268, %v415, %v375
        %v417 = vsel %vm404, %v416, %v399
        %v418 = vadd.f32 %v414, %v417
        %419 = vst [vmem:[#allocation10] sm:$0xf] %v418
        // Predicated region
        $region41: #{tpu_custom_call.1} parent=27 // pred_check
          %p420 = pneg %p105
        $region42: #{tpu_custom_call.1} parent=27 // pred_check_branch
          %422 = sbr.rel (%p420) target = $region44
        $region43: #{tpu_custom_call.1} parent=27 // pred_region
          %s424 = ssub.s32 64, 64
          %425 = vsyncadd [#allocation4], %s424
          %s427 = sshll.u32 [#allocation7], 4
          %s428 = int_to_ptr.vmem [resolvable:$true] %s427
          %430 = dma.vmem_to_hbm [thread:$0]  %s428, 64, %s2, [#allocation4]
        $region44: #{tpu_custom_call.1} parent=27 // pred_fallthru
          _
        // Predicated region
        $region45: #{tpu_custom_call.1} parent=27 // pred_check
          %p431 = pneg %p126
        $region46: #{tpu_custom_call.1} parent=27 // pred_check_branch
          %433 = sbr.rel (%p431) target = $region48
        $region47: #{tpu_custom_call.1} parent=27 // pred_region
          %s435 = ssub.s32 64, 64
          %436 = vsyncadd [#allocation9], %s435
          %s438 = sshll.u32 [#allocation8], 4
          %s439 = int_to_ptr.vmem [resolvable:$true] %s438
          %441 = dma.vmem_to_hbm [thread:$0]  %s439, 64, %s3, [#allocation9]
        $region48: #{tpu_custom_call.1} parent=27 // pred_fallthru
          _
        // Predicated region
        $region49: #{tpu_custom_call.1} parent=27 // pred_check
          %p442 = pneg %p147
        $region50: #{tpu_custom_call.1} parent=27 // pred_check_branch
          %444 = sbr.rel (%p442) target = $region52
        $region51: #{tpu_custom_call.1} parent=27 // pred_region
          %s446 = ssub.s32 64, 64
          %447 = vsyncadd [#allocation9], %s446
          %s449 = sshll.u32 [#allocation10], 4
          %s450 = int_to_ptr.vmem [resolvable:$true] %s449
          %452 = dma.vmem_to_hbm [thread:$0]  %s450, 64, %s4, [#allocation9]
        $region52: #{tpu_custom_call.1} parent=27 // pred_fallthru
          _
        // Predicated region
        $region53: #{tpu_custom_call.1} parent=27 // pred_check
          %p453 = pneg %p105
        $region54: #{tpu_custom_call.1} parent=27 // pred_check_branch
          %455 = sbr.rel (%p453) target = $region56
        $region55: #{tpu_custom_call.1} parent=27 // pred_region
          %456 = dma.done [#allocation4], 64
        $region56: #{tpu_custom_call.1} parent=27 // pred_fallthru
          _
        // Predicated region
        $region57: #{tpu_custom_call.1} parent=27 // pred_check
          %p457 = pneg %p126
        $region58: #{tpu_custom_call.1} parent=27 // pred_check_branch
          %459 = sbr.rel (%p457) target = $region60
        $region59: #{tpu_custom_call.1} parent=27 // pred_region
          %460 = dma.done [#allocation9], 64
        $region60: #{tpu_custom_call.1} parent=27 // pred_fallthru
          _
        // Predicated region
        $region61: #{tpu_custom_call.1} parent=27 // pred_check
          %p461 = pneg %p147
        $region62: #{tpu_custom_call.1} parent=27 // pred_check_branch
          %463 = sbr.rel (%p461) target = $region64
        $region63: #{tpu_custom_call.1} parent=27 // pred_region
          %464 = dma.done [#allocation9], 64
        $region64: #{tpu_custom_call.1} parent=27 // pred_fallthru
          _
      $region28: #{tpu_custom_call.1} parent=5 // pred_fallthru
        _
      %p465 = scmp.le.s32.totalorder 2, %s19
      // Predicated region
      $region65: #{tpu_custom_call.1} parent=5 // pred_check
        %p466 = pneg %p465
      $region66: #{tpu_custom_call.1} parent=5 // pred_check_branch
        %468 = sbr.rel (%p466) target = $region68
      $region67: #{tpu_custom_call.1} parent=5 // pred_region
        %s469 = ssub.s32 %s19, 2
      $region68: #{tpu_custom_call.1} parent=5 // pred_fallthru
        _
    $region6: #{tpu_custom_call.1} parent=1 // loop_footer
      %s23 = sadd.s32 1, %s19
    $region7: #{tpu_custom_call.1} parent=1 // loop_footer_branch
      %18 = sbr.rel target = $region3
    $region8: #{tpu_custom_call.1} parent=1 // loop_exit
      _
    %470 = vsyncpa [#allocation3], 1
    %s471 = scalar_lea.sflag [#allocation3], 1
    %472 = vsyncpa %s471, 1
    %473 = vsyncpa [#allocation6], 1
    %s474 = scalar_lea.sflag [#allocation6], 1
    %475 = vsyncpa %s474, 1
    %476 = vsyncpa [#allocation4], 1
    %s477 = scalar_lea.sflag [#allocation4], 1
    %478 = vsyncpa %s477, 1
    %479 = vsyncpa [#allocation9], 1

</llo_original>
